<compile_context>
chip_gen: v7x
topology: tpu7x:2x2x1
jax: 0.10.0
libtpu: 0.0.40
codegen_flags: <defaults>
</compile_context>

<pallas_src>
import functools

import jax
import jax.numpy as jnp
import numpy as np
from jax import lax
from jax.experimental import pallas as pl
from jax.experimental.pallas import tpu as pltpu

LANES = 128
SUBLANES = 8


def _bce_elementwise(x, t):
    # Numerically-stable BCE-with-logits (same formula PyTorch uses).
    return jnp.maximum(x, 0.0) - x * t + jnp.log1p(jnp.exp(-jnp.abs(x)))


# --------------------------------------------------------------------------
# Small-input path: whole problem resident in VMEM, no grid, no pipeline.
# --------------------------------------------------------------------------
def _bce_kernel_single(x_ref, t_ref, o_ref, *, inv_n, n_valid, masked):
    x = x_ref[...].astype(jnp.float32)
    t = t_ref[...].astype(jnp.float32)
    loss = _bce_elementwise(x, t)
    if masked:  # static Python decision: only emitted when padding exists
        rows, cols = x.shape
        row_idx = lax.broadcasted_iota(jnp.int32, (rows, cols), 0)
        col_idx = lax.broadcasted_iota(jnp.int32, (rows, cols), 1)
        loss = jnp.where(row_idx * cols + col_idx < n_valid, loss, 0.0)
    # mean = sum * (1/n); 1/n folded as a compile-time constant (no divide).
    o_ref[0, 0] = jnp.sum(loss) * jnp.float32(inv_n)


# --------------------------------------------------------------------------
# Large-input path: streaming reduction over a (parallel, arbitrary) grid.
# Accumulates (8,128) partial sums into the resident VMEM output block.
# --------------------------------------------------------------------------
def _bce_kernel_grid(x_ref, t_ref, o_ref, *, rem, masked):
    i = pl.program_id(1)

    @pl.when(i == 0)
    def _():
        o_ref[...] = jnp.zeros_like(o_ref)

    x = x_ref[...].astype(jnp.float32)
    t = t_ref[...].astype(jnp.float32)
    loss = _bce_elementwise(x, t)

    def _accum(l):
        # (block_rows,128) -> (block_rows/8, 8, 128): per-vreg VPU adds only.
        o_ref[...] += l.reshape(-1, SUBLANES, LANES).sum(axis=0, keepdims=True)

    if masked:
        # Padding / ragged data lives only in the globally-last block, so the
        # mask (iotas + compare + select) runs on that single step only.
        is_last = ((pl.program_id(0) == pl.num_programs(0) - 1)
                   & (i == pl.num_programs(1) - 1))
        rows_blk, cols = x.shape

        @pl.when(is_last)
        def _():
            row_idx = lax.broadcasted_iota(jnp.int32, (rows_blk, cols), 0)
            col_idx = lax.broadcasted_iota(jnp.int32, (rows_blk, cols), 1)
            _accum(jnp.where(row_idx * cols + col_idx < rem, loss, 0.0))

        @pl.when(jnp.logical_not(is_last))
        def _():
            _accum(loss)
    else:
        _accum(loss)


def bce_with_logits_mean(logits, targets, *, block_rows=4096,
                         single_block_rows=1024):
    """Mean binary_cross_entropy_with_logits over all elements (f32 scalar)."""
    assert logits.shape == targets.shape
    n = logits.size
    inv_n = 1.0 / float(n)

    # Free metadata reshape to a lane-dense slab; pad (one HBM copy) only when
    # the element count is not already a multiple of 128.
    x_flat = logits.reshape(-1)
    t_flat = targets.reshape(-1)
    n_pad = pl.cdiv(n, LANES) * LANES
    if n_pad != n:
        x_flat = jnp.pad(x_flat, (0, n_pad - n))
        t_flat = jnp.pad(t_flat, (0, n_pad - n))
    rows = n_pad // LANES
    x2d = x_flat.reshape(rows, LANES)
    t2d = t_flat.reshape(rows, LANES)

    if rows <= single_block_rows:
        # Tiny input: single resident block, no grid, scalar mean to SMEM.
        out = pl.pallas_call(
            functools.partial(_bce_kernel_single, inv_n=inv_n,
                              n_valid=n, masked=(n_pad != n)),
            out_shape=jax.ShapeDtypeStruct((1, 1), jnp.float32),
            in_specs=[pl.BlockSpec(memory_space=pltpu.VMEM),
                      pl.BlockSpec(memory_space=pltpu.VMEM)],
            out_specs=pl.BlockSpec(memory_space=pltpu.SMEM),
        )(x2d, t2d)
        return out[0, 0]

    # ---- grid path: choose block count (>= 2 steps, even when possible so
    # ---- both v7x TensorCores get equal shares), no wrapper-side padding.
    num_blocks = max(2, pl.cdiv(rows, block_rows))
    if num_blocks % 2:
        num_blocks += 1
    eff_block_rows = pl.cdiv(pl.cdiv(rows, num_blocks), SUBLANES) * SUBLANES
    num_blocks = pl.cdiv(rows, eff_block_rows)          # <= block_rows rows
    num_parallel = 2 if num_blocks % 2 == 0 else 1
    inner = num_blocks // num_parallel

    covered = num_blocks * eff_block_rows * LANES
    masked = covered != n                       # tail pad and/or ragged block
    rem = n - (num_blocks - 1) * eff_block_rows * LANES   # valid in last block

    partials = pl.pallas_call(
        functools.partial(_bce_kernel_grid, rem=rem, masked=masked),
        out_shape=jax.ShapeDtypeStruct((num_parallel, SUBLANES, LANES),
                                       jnp.float32),
        grid=(num_parallel, inner),
        in_specs=[
            pl.BlockSpec((eff_block_rows, LANES),
                         lambda p, i: (p * inner + i, 0)),
            pl.BlockSpec((eff_block_rows, LANES),
                         lambda p, i: (p * inner + i, 0)),
        ],
        out_specs=pl.BlockSpec((1, SUBLANES, LANES), lambda p, i: (p, 0, 0)),
        compiler_params=pltpu.CompilerParams(
            dimension_semantics=("parallel", "arbitrary")),
    )(x2d, t2d)
    # Tiny finalize on a (P,8,128) array: single cross-lane reduce + 1/n scale.
    return jnp.sum(partials) * jnp.float32(inv_n)


def _ref_loss(x, t):
    # float64 numpy reference (same stable formula).
    x64 = np.asarray(x, dtype=np.float64)
    t64 = np.asarray(t, dtype=np.float64)
    l = np.maximum(x64, 0.0) - x64 * t64 + np.log1p(np.exp(-np.abs(x64)))
    return l.mean()


if __name__ == "__main__":
    key = jax.random.PRNGKey(0)
    loss_fn = jax.jit(bce_with_logits_mean)
    k1, k2, k3, k4, k5, k6, k7, k8 = jax.random.split(key, 8)

    # 1) Module-sized NCHW input (2, 4, 16, 16): single-block, no-grid path.
    x = jax.random.normal(k1, (2, 4, 16, 16), dtype=jnp.float32)
    t = jax.random.uniform(k2, (2, 4, 16, 16), dtype=jnp.float32)
    loss = jax.block_until_ready(loss_fn(x, t))
    assert np.allclose(float(loss), _ref_loss(x, t), rtol=1e-4, atol=1e-5), (
        float(loss), _ref_loss(x, t))

    # 2) Odd size (needs lane padding + mask), still single-block path.
    x_odd = jax.random.normal(k3, (3, 5, 17, 19), dtype=jnp.float32)
    t_odd = jax.random.uniform(k4, (3, 5, 17, 19), dtype=jnp.float32)
    loss_odd = jax.block_until_ready(loss_fn(x_odd, t_odd))
    assert np.allclose(float(loss_odd), _ref_loss(x_odd, t_odd),
                       rtol=1e-4, atol=1e-5), (float(loss_odd),
                                               _ref_loss(x_odd, t_odd))

    # 3) Larger aligned input: exercises the (parallel, arbitrary) grid path.
    x_big = jax.random.normal(k5, (4, 8, 64, 128), dtype=jnp.float32)
    t_big = jax.random.uniform(k6, (4, 8, 64, 128), dtype=jnp.float32)
    loss_big = jax.block_until_ready(loss_fn(x_big, t_big))
    assert np.allclose(float(loss_big), _ref_loss(x_big, t_big),
                       rtol=1e-4, atol=1e-5), (float(loss_big),
                                               _ref_loss(x_big, t_big))

    # 4) Larger NON-aligned input: grid path with a ragged, masked tail block.
    x_rag = jax.random.normal(k7, (3, 7, 71, 93), dtype=jnp.float32)
    t_rag = jax.random.uniform(k8, (3, 7, 71, 93), dtype=jnp.float32)
    loss_rag = jax.block_until_ready(loss_fn(x_rag, t_rag))
    assert np.allclose(float(loss_rag), _ref_loss(x_rag, t_rag),
                       rtol=1e-4, atol=1e-5), (float(loss_rag),
                                               _ref_loss(x_rag, t_rag))

    print("KERNEL_OK")
</pallas_src>

<mosaic_0001>
module attributes {stable_mosaic.version = 11 : i64} {
  func.func @_bce_kernel_single(%arg0: memref<16x128xf32, #tpu.memory_space<vmem>>, %arg1: memref<16x128xf32, #tpu.memory_space<vmem>>, %arg2: memref<1x1xf32, #tpu.memory_space<smem>>) attributes {dimension_semantics = [], scalar_prefetch = 0 : i64, scratch_operands = 0 : i64, tpu.core_type = #tpu.core_type<tc>} {
    %c0 = arith.constant 0 : index
    %c0_0 = arith.constant 0 : index
    %0 = vector.load %arg0[%c0, %c0_0] : memref<16x128xf32, #tpu.memory_space<vmem>>, vector<16x128xf32>
    %c0_1 = arith.constant 0 : index
    %c0_2 = arith.constant 0 : index
    %1 = vector.load %arg1[%c0_1, %c0_2] : memref<16x128xf32, #tpu.memory_space<vmem>>, vector<16x128xf32>
    %cst = arith.constant 0.000000e+00 : f32
    %2 = vector.broadcast %cst : f32 to vector<16x128xf32>
    %3 = arith.maximumf %0, %2 : vector<16x128xf32>
    %4 = arith.mulf %0, %1 : vector<16x128xf32>
    %5 = arith.subf %3, %4 : vector<16x128xf32>
    %6 = math.absf %0 : vector<16x128xf32>
    %cst_3 = arith.constant 0.000000e+00 : f32
    %7 = vector.broadcast %cst_3 : f32 to vector<16x128xf32>
    %8 = arith.subf %7, %6 : vector<16x128xf32>
    %9 = math.exp %8 : vector<16x128xf32>
    %10 = math.log1p %9 : vector<16x128xf32>
    %11 = arith.addf %5, %10 : vector<16x128xf32>
    %12 = vector.shape_cast %11 : vector<16x128xf32> to vector<1x16x128xf32>
    %cst_4 = arith.constant dense<0.000000e+00> : vector<1xf32>
    %13 = vector.multi_reduction <add>, %12, %cst_4 [1, 2] : vector<1x16x128xf32> to vector<1xf32>
    %14 = vector.shape_cast %13 : vector<1xf32> to vector<1x1x1xf32>
    %15 = vector.extract %14[0, 0, 0] : f32 from vector<1x1x1xf32>
    %cst_5 = arith.constant 4.8828125E-4 : f32
    %16 = arith.mulf %15, %cst_5 : f32
    %c0_6 = arith.constant 0 : index
    %c0_7 = arith.constant 0 : index
    %17 = memref.load %arg2[%c0_6, %c0_7] : memref<1x1xf32, #tpu.memory_space<smem>>
    memref.store %16, %arg2[%c0_6, %c0_7] : memref<1x1xf32, #tpu.memory_space<smem>>
    return
  }
}

</mosaic_0001>

<llo_original>
// kernel: bce_with_logits_mean.1
$region0: #{bce_with_logits_mean.1}
  #allocation0 [shape = 'u32[]', space=smem, size = 0x4, offset = 0x4, fixed_abs, tag = 'smem constant byte address 0x4 - core index']
  #allocation1 [shape = 'u32[144,128]{1,0:T(1,128)}', space=vmem, size = 0x12000, scoped, tag = 'internal scratch']
  %s0 = inlined_call_operand.vmem [shape: f32[16,128], index: 0, kind: input, shape index: {}]
  %s1 = inlined_call_operand.vmem [shape: f32[16,128], index: 1, kind: input, shape index: {}]
  %s2 = inlined_call_operand.hbm [shape: f32[1,1], index: 2, kind: output, shape index: {}]
  %s3 = sld [smem:[#allocation0]]
  $region18: #{bce_with_logits_mean.1} parent=0
    _
  %s5 = ssub.s32 1, %s3
  %s6 = scalar_select 0, %s5, %s3
  $region1: #{bce_with_logits_mean.1} parent=0
    #allocation2 [shape = 'u8[512]{0}', space=smem, size = 0x200, scoped, tag = 'output window, operand 0, single buffered']
    #allocation3 [shape = 's32[1]{0}', space=sflag, size = 0x4, scoped, tag = 'scoped memory for bce_with_logits_mean.1']
    %7 = vsyncpa [#allocation3], 0
    // Predicated region
    $region2: #{bce_with_logits_mean.1} parent=1 // pred_check
      _
    $region3: #{bce_with_logits_mean.1} parent=1 // pred_check_branch
      %9 = sbr.rel (0) target = $region5
    $region4: #{bce_with_logits_mean.1} parent=1 // pred_region
      _
    $region5: #{bce_with_logits_mean.1} parent=1 // pred_fallthru
      _
    // Predicated region
    $region6: #{bce_with_logits_mean.1} parent=1 // pred_check
      _
    $region7: #{bce_with_logits_mean.1} parent=1 // pred_check_branch
      %11 = sbr.rel (0) target = $region9
    $region8: #{bce_with_logits_mean.1} parent=1 // pred_region
      _
    $region9: #{bce_with_logits_mean.1} parent=1 // pred_fallthru
      _
    %v12 = vld [vmem:[%s0] sm:$0xff]
    %v13 = vld [vmem:[%s0 + $0x8] sm:$0xff]
    %v14 = vld [vmem:[%s1] sm:$0xff]
    %v15 = vld [vmem:[%s1 + $0x8] sm:$0xff]
    %v16 = vmax.f32 %v12, 0.0
    %v17 = vmax.f32 %v13, 0.0
    %v18 = vmul.f32 %v12, %v14
    %v19 = vmul.f32 %v13, %v15
    %v20 = vsub.f32 %v16, %v18
    %v21 = vsub.f32 %v17, %v19
    %v22 = vand.u32 2147483647, %v12
    %v23 = vand.u32 2147483647, %v13
    %v24 = vsub.f32 0.0, %v22
    %v25 = vsub.f32 0.0, %v23
    %v26 = vmul.f32 %v24, 1.442695
    %v27 = vpow.pop %v26
    %v28 = vmul.f32 %v25, 1.442695
    %v29 = vpow.pop %v28
    %v30 = vadd.f32 %v27, 1.0
    %v31 = vlog2.pop %v30
    %v32 = vmul.f32 %v31, 0.6931472
    %v33 = vmul.f32 -0.5, %v27
    %v34 = vadd.f32 %v33, 1.0
    %v35 = vmul.f32 %v34, %v27
    %v36 = vand.u32 2147483647, %v27
    %vm37 = vcmp.lt.f32.partialorder %v36, 0.0004427343
    %v38 = vsel %vm37, %v35, %v32
    %v39 = vadd.f32 %v29, 1.0
    %v40 = vlog2.pop %v39
    %v41 = vmul.f32 %v40, 0.6931472
    %v42 = vmul.f32 -0.5, %v29
    %v43 = vadd.f32 %v42, 1.0
    %v44 = vmul.f32 %v43, %v29
    %v45 = vand.u32 2147483647, %v29
    %vm46 = vcmp.lt.f32.partialorder %v45, 0.0004427343
    %v47 = vsel %vm46, %v44, %v41
    %v48 = vadd.f32 %v20, %v38
    %v49 = vadd.f32 %v21, %v47
    %v50 = vadd.f32 %v48, %v49
    %51 = vadd.xlane.f32.xlu0 %v50
    %v52 = vpop.xlane.xlu0 %51
    %v53 = vrot.slane %v52, 4
    %v54 = vadd.f32 %v52, %v53
    %v55 = vrot.slane %v54, 2
    %v56 = vadd.f32 %v54, %v55
    %v57 = vrot.slane %v56, 1
    %v58 = vadd.f32 %v56, %v57
    %s59 = vtos %v58
    %s60 = smul.f32 %s59, 0.00048828125
    %s61 = scalar_lea.smem [#allocation2], 0
    %62 = sst [smem:[%s61]] %s60
    // Predicated region
    $region10: #{bce_with_logits_mean.1} parent=1 // pred_check
      _
    $region11: #{bce_with_logits_mean.1} parent=1 // pred_check_branch
      %64 = sbr.rel (0) target = $region13
    $region12: #{bce_with_logits_mean.1} parent=1 // pred_region
      %s66 = ssub.s32 16, 16
      %67 = vsyncadd [#allocation3], %s66
      %70 = dma.smem_to_hbm [#allocation2], 16, %s2, [#allocation3]
    $region13: #{bce_with_logits_mean.1} parent=1 // pred_fallthru
      _
    // Predicated region
    $region14: #{bce_with_logits_mean.1} parent=1 // pred_check
      _
    $region15: #{bce_with_logits_mean.1} parent=1 // pred_check_branch
      %72 = sbr.rel (0) target = $region17
    $region16: #{bce_with_logits_mean.1} parent=1 // pred_region
      %73 = dma.done [#allocation3], 16
    $region17: #{bce_with_logits_mean.1} parent=1 // pred_fallthru
      _
    %74 = sfence
    %75 = vsyncpa [#allocation3], 1

</llo_original>
